<compile_context>
chip_gen: v7x
topology: tpu7x:2x2x1
jax: 0.10.0
libtpu: 0.0.40
codegen_flags: <defaults>
</compile_context>

<pallas_src>
import jax
import jax.numpy as jnp
from jax import lax
from jax.experimental import pallas as pl
from jax.experimental.pallas import tpu as pltpu

# --- module hyper-parameters (the PyTorch code reads these from globals) ---
X_FEATURES = 4
HIDDEN_SIZE = 32
X_SEQ_LEN = 8
X_BATCHES = 2
X_SEQS = 2
B = X_BATCHES * X_SEQS              # flattened LSTM batch after the first .view
B_PAD = max(8, ((B + 7) // 8) * 8)  # pad to a full 8-sublane group
NSEL = X_BATCHES * X_SEQS           # rows of the final Linear actually consumed

# Rows of the flattened (T*B, 1) linear output consumed by out[:, :, -1]
# (PyTorch .view quirk), expressed as (timestep, batch-row) pairs.
_LAST_ROWS = [k * X_SEQ_LEN + (X_SEQ_LEN - 1) for k in range(NSEL)]
_CONSUMED_TB = [(r // B, r % B) for r in _LAST_ROWS]      # [(1,3),(3,3),(5,3),(7,3)]

# Packed parameter slab layout (rows of a (SLAB_ROWS, 4H) f32 array):
#   [0, H)          W_hh^T   (gate-permuted, tile-aligned)
#   [H, H+F)        W_ih^T   (gate-permuted)
#   H+F             b_ih + b_hh (gate-permuted)
#   H+F+1           linear weight as a row (lanes [0, H)), rest zero
#   H+F+2           linear bias at lane 0
#   remaining       zero padding up to a multiple of 8 rows
_SLAB_USED = HIDDEN_SIZE + X_FEATURES + 3
SLAB_ROWS = ((_SLAB_USED + 7) // 8) * 8


def _lstm_linear_kernel(x_ref, w_ref, out_ref):
    """Whole LSTM (T steps) + the consumed part of Linear(H, 1), one invocation."""
    H, F, T, Bp = HIDDEN_SIZE, X_FEATURES, X_SEQ_LEN, B_PAD

    whh = w_ref[0:H, :]                          # (H, 4H), loaded once
    wih = w_ref[H:H + F, :]                      # (F, 4H)
    bias = w_ref[H + F:H + F + 1, :]             # (1, 4H) combined bias
    wlin_row = w_ref[H + F + 1:H + F + 2, :]     # (1, 4H); lanes [0,H) = linear weight
    blin = w_ref[H + F + 2:H + F + 3, :][:, :1]  # (1, 1)

    # Hoisted input projection for ALL timesteps: ONE (T*Bp, F) x (F, 4H) matmul,
    # combined bias broadcast exactly once.
    xw = (jnp.dot(x_ref[...], wih, preferred_element_type=jnp.float32)
          + bias)                                # (T*Bp, 4H)

    h = jnp.zeros((Bp, H), jnp.float32)
    c = jnp.zeros((Bp, H), jnp.float32)
    sel = []                                     # consumed hidden-state rows (vregs)

    # Fully-unrolled recurrence; per step only one (Bp, H) x (H, 4H) MXU dot
    # plus fused-gate VPU/EUP elementwise work remains on the serial path.
    for t in range(T):
        gates = xw[t * Bp:(t + 1) * Bp, :] + jnp.dot(
            h, whh, preferred_element_type=jnp.float32)        # (Bp, 4H) = one f32 vreg
        sg = jax.nn.sigmoid(gates[:, :3 * H])                  # i, f, o in one dispatch
        g_g = jnp.tanh(gates[:, 3 * H:])                       # g
        i_g = sg[:, 0:H]
        f_g = sg[:, H:2 * H]
        o_g = sg[:, 2 * H:3 * H]
        c = f_g * c + i_g * g_g
        h = o_g * jnp.tanh(c)
        for (tt, bb) in _CONSUMED_TB:                          # static Python filter
            if tt == t:
                sel.append(h[bb:bb + 1, :])                    # (1, H), stays in vregs

    h_sel = jnp.concatenate(sel, axis=0)                       # (NSEL, H)
    # Final Linear only on the consumed rows: elementwise mul + lane reduction
    # (avoids any transposed-matmul lowering), then ONE tiny output store.
    y = jnp.sum(h_sel * wlin_row[:, :H], axis=1, keepdims=True) + blin   # (NSEL, 1)
    out_ref[...] = y


def lstm_linear_pallas(x_pad, slab):
    """x_pad: (T*B_PAD, F) t-major, batch-padded -> (NSEL, 1) consumed outputs."""
    vmem = lambda: pl.BlockSpec(memory_space=pltpu.MemorySpace.VMEM)
    return pl.pallas_call(
        _lstm_linear_kernel,
        out_shape=jax.ShapeDtypeStruct((NSEL, 1), jnp.float32),
        in_specs=[vmem(), vmem()],           # 2 DMAs total: activations + weight slab
        out_specs=vmem(),
    )(x_pad, slab)


def _permute_gate_cols(w):
    """Reorder last-axis gate blocks from PyTorch (i, f, g, o) to (i, f, o, g)."""
    H = HIDDEN_SIZE
    return jnp.concatenate([w[..., :2 * H], w[..., 3 * H:], w[..., 2 * H:3 * H]],
                           axis=-1)


def _pack_params(wih, whh, bih, bhh, wlin, blin):
    """Pack all parameters into one lane-dense (SLAB_ROWS, 4H) f32 slab."""
    H, F = HIDDEN_SIZE, X_FEATURES
    G = 4 * H
    whh_t = _permute_gate_cols(whh.T.astype(jnp.float32))          # (H, 4H)
    wih_t = _permute_gate_cols(wih.T.astype(jnp.float32))          # (F, 4H)
    bias = _permute_gate_cols((bih + bhh).astype(jnp.float32)).reshape(1, G)
    wlin_row = jnp.zeros((1, G), jnp.float32).at[0, :H].set(
        jnp.reshape(wlin, (H,)).astype(jnp.float32))
    blin_row = jnp.zeros((1, G), jnp.float32).at[0, 0].set(
        jnp.reshape(blin, ()).astype(jnp.float32))
    pad = jnp.zeros((SLAB_ROWS - _SLAB_USED, G), jnp.float32)
    return jnp.concatenate([whh_t, wih_t, bias, wlin_row, blin_row, pad], axis=0)


@jax.jit
def env_lstm_forward(x, params):
    """Exact semantics of env_LSTM.forward (including the raw .view reshapes)."""
    wih, whh, bih, bhh, wlin, blin = params
    # x.view(x_seq_len, -1, x_features): raw row-major reinterpretation.
    x_seq = jnp.reshape(x, (X_SEQ_LEN, B, X_FEATURES)).astype(jnp.float32)
    # Zero-pad batch 4 -> 8 (one full sublane group); padded rows are dead.
    x_pad = jnp.pad(x_seq, ((0, 0), (0, B_PAD - B), (0, 0)))
    x_pad = jnp.reshape(x_pad, (X_SEQ_LEN * B_PAD, X_FEATURES))
    slab = _pack_params(wih, whh, bih, bhh, wlin, blin)

    y = lstm_linear_pallas(x_pad, slab)                     # (NSEL, 1)
    # Kernel row k == flattened (x_batches, x_seqs) index k of
    # out.view(x_batches, x_seqs, x_seq_len, -1)[:, :, -1].unsqueeze(-1).
    return jnp.reshape(y, (X_BATCHES, X_SEQS, 1, 1))


def env_lstm_reference(x, params):
    """Pure-JAX reference (lax.scan LSTM, full linear + .view select)."""
    wih, whh, bih, bhh, wlin, blin = params
    x_seq = jnp.reshape(x, (X_SEQ_LEN, -1, X_FEATURES)).astype(jnp.float32)
    Bn = x_seq.shape[1]

    def step(carry, xt):
        h, c = carry
        gates = xt @ wih.T + bih + h @ whh.T + bhh
        i, f, g, o = jnp.split(gates, 4, axis=-1)
        i = jax.nn.sigmoid(i); f = jax.nn.sigmoid(f)
        g = jnp.tanh(g); o = jax.nn.sigmoid(o)
        c = f * c + i * g
        h = o * jnp.tanh(c)
        return (h, c), h

    init = (jnp.zeros((Bn, HIDDEN_SIZE), jnp.float32),
            jnp.zeros((Bn, HIDDEN_SIZE), jnp.float32))
    _, hs = lax.scan(step, init, x_seq)                     # (T, B, H)
    out = hs @ wlin.reshape(HIDDEN_SIZE, 1) + blin.reshape(1, 1)
    out = jnp.reshape(out, (X_BATCHES, X_SEQS, X_SEQ_LEN, 1))
    return out[:, :, -1][..., None]


def init_params(key):
    """PyTorch-style uniform(-1/sqrt(H), 1/sqrt(H)) init, deterministic."""
    H, F = HIDDEN_SIZE, X_FEATURES
    bound = 1.0 / jnp.sqrt(jnp.float32(H))
    ks = jax.random.split(key, 6)
    wih = jax.random.uniform(ks[0], (4 * H, F), jnp.float32, -bound, bound)
    whh = jax.random.uniform(ks[1], (4 * H, H), jnp.float32, -bound, bound)
    bih = jax.random.uniform(ks[2], (4 * H,), jnp.float32, -bound, bound)
    bhh = jax.random.uniform(ks[3], (4 * H,), jnp.float32, -bound, bound)
    wlin = jax.random.uniform(ks[4], (1, H), jnp.float32, -bound, bound)
    blin = jax.random.uniform(ks[5], (1,), jnp.float32, -bound, bound)
    return wih, whh, bih, bhh, wlin, blin


if __name__ == "__main__":
    key = jax.random.PRNGKey(0)
    k_x, k_p = jax.random.split(key)

    # input consistent with forward: x.view(x_seq_len, -1, x_features)
    x = jax.random.normal(
        k_x, (X_BATCHES, X_SEQS, X_SEQ_LEN, X_FEATURES), jnp.float32)
    params = init_params(k_p)

    y_pred = jax.block_until_ready(env_lstm_forward(x, params))
    y_ref = env_lstm_reference(x, params)

    assert y_pred.shape == (X_BATCHES, X_SEQS, 1, 1), y_pred.shape
    assert jnp.allclose(y_pred, y_ref, atol=1e-5, rtol=1e-5), "mismatch vs reference"

    print("KERNEL_OK")
</pallas_src>

<mosaic_0001>
module attributes {stable_mosaic.version = 11 : i64} {
  func.func @_lstm_linear_kernel(%arg0: memref<64x4xf32, #tpu.memory_space<vmem>>, %arg1: memref<40x128xf32, #tpu.memory_space<vmem>>, %arg2: memref<4x1xf32, #tpu.memory_space<vmem>>) attributes {dimension_semantics = [], scalar_prefetch = 0 : i64, scratch_operands = 0 : i64, tpu.core_type = #tpu.core_type<tc>} {
    %c0 = arith.constant 0 : index
    %c0_0 = arith.constant 0 : index
    %0 = vector.load %arg1[%c0, %c0_0] : memref<40x128xf32, #tpu.memory_space<vmem>>, vector<32x128xf32>
    %c32 = arith.constant 32 : index
    %c0_1 = arith.constant 0 : index
    %1 = vector.load %arg1[%c32, %c0_1] : memref<40x128xf32, #tpu.memory_space<vmem>>, vector<4x128xf32>
    %c36 = arith.constant 36 : index
    %c0_2 = arith.constant 0 : index
    %2 = vector.load %arg1[%c36, %c0_2] : memref<40x128xf32, #tpu.memory_space<vmem>>, vector<1x128xf32>
    %c37 = arith.constant 37 : index
    %c0_3 = arith.constant 0 : index
    %3 = vector.load %arg1[%c37, %c0_3] : memref<40x128xf32, #tpu.memory_space<vmem>>, vector<1x128xf32>
    %c38 = arith.constant 38 : index
    %c0_4 = arith.constant 0 : index
    %4 = vector.load %arg1[%c38, %c0_4] : memref<40x128xf32, #tpu.memory_space<vmem>>, vector<1x128xf32>
    %5 = vector.extract_strided_slice %4 {offsets = [0, 0], sizes = [1, 1], strides = [1, 1]} : vector<1x128xf32> to vector<1x1xf32>
    %c0_5 = arith.constant 0 : index
    %c0_6 = arith.constant 0 : index
    %6 = vector.load %arg0[%c0_5, %c0_6] : memref<64x4xf32, #tpu.memory_space<vmem>>, vector<64x4xf32>
    %cst = arith.constant dense<0.000000e+00> : vector<64x128xf32>
    %7 = tpu.matmul %6, %1, %cst {dimension_numbers = #tpu.dot_dimension_numbers<[1], [0], [0], [1], [0, 0, 1, 1], [], []>} : vector<64x4xf32>, vector<4x128xf32>, vector<64x128xf32> -> vector<64x128xf32>
    %8 = vector.broadcast %2 : vector<1x128xf32> to vector<64x128xf32>
    %9 = arith.addf %7, %8 : vector<64x128xf32>
    %cst_7 = arith.constant 0.000000e+00 : f32
    %10 = vector.broadcast %cst_7 : f32 to vector<8x32xf32>
    %cst_8 = arith.constant 0.000000e+00 : f32
    %11 = vector.broadcast %cst_8 : f32 to vector<8x32xf32>
    %12 = vector.extract_strided_slice %9 {offsets = [0, 0], sizes = [8, 128], strides = [1, 1]} : vector<64x128xf32> to vector<8x128xf32>
    %cst_9 = arith.constant dense<0.000000e+00> : vector<8x128xf32>
    %13 = tpu.matmul %10, %0, %cst_9 {dimension_numbers = #tpu.dot_dimension_numbers<[1], [0], [0], [1], [0, 0, 1, 1], [], []>} : vector<8x32xf32>, vector<32x128xf32>, vector<8x128xf32> -> vector<8x128xf32>
    %14 = arith.addf %12, %13 : vector<8x128xf32>
    %15 = vector.extract_strided_slice %14 {offsets = [0, 0], sizes = [8, 96], strides = [1, 1]} : vector<8x128xf32> to vector<8x96xf32>
    %16 = arith.negf %15 : vector<8x96xf32>
    %17 = math.exp %16 : vector<8x96xf32>
    %cst_10 = arith.constant 1.000000e+00 : f32
    %18 = vector.broadcast %cst_10 : f32 to vector<8x96xf32>
    %19 = arith.addf %18, %17 : vector<8x96xf32>
    %20 = arith.divf %18, %19 : vector<8x96xf32>
    %21 = vector.extract_strided_slice %14 {offsets = [0, 96], sizes = [8, 32], strides = [1, 1]} : vector<8x128xf32> to vector<8x32xf32>
    %22 = math.tanh %21 : vector<8x32xf32>
    %23 = vector.extract_strided_slice %20 {offsets = [0, 0], sizes = [8, 32], strides = [1, 1]} : vector<8x96xf32> to vector<8x32xf32>
    %24 = vector.extract_strided_slice %20 {offsets = [0, 32], sizes = [8, 32], strides = [1, 1]} : vector<8x96xf32> to vector<8x32xf32>
    %25 = vector.extract_strided_slice %20 {offsets = [0, 64], sizes = [8, 32], strides = [1, 1]} : vector<8x96xf32> to vector<8x32xf32>
    %26 = arith.mulf %24, %11 : vector<8x32xf32>
    %27 = arith.mulf %23, %22 : vector<8x32xf32>
    %28 = arith.addf %26, %27 : vector<8x32xf32>
    %29 = math.tanh %28 : vector<8x32xf32>
    %30 = arith.mulf %25, %29 : vector<8x32xf32>
    %31 = vector.extract_strided_slice %9 {offsets = [8, 0], sizes = [8, 128], strides = [1, 1]} : vector<64x128xf32> to vector<8x128xf32>
    %cst_11 = arith.constant dense<0.000000e+00> : vector<8x128xf32>
    %32 = tpu.matmul %30, %0, %cst_11 {dimension_numbers = #tpu.dot_dimension_numbers<[1], [0], [0], [1], [0, 0, 1, 1], [], []>} : vector<8x32xf32>, vector<32x128xf32>, vector<8x128xf32> -> vector<8x128xf32>
    %33 = arith.addf %31, %32 : vector<8x128xf32>
    %34 = vector.extract_strided_slice %33 {offsets = [0, 0], sizes = [8, 96], strides = [1, 1]} : vector<8x128xf32> to vector<8x96xf32>
    %35 = arith.negf %34 : vector<8x96xf32>
    %36 = math.exp %35 : vector<8x96xf32>
    %cst_12 = arith.constant 1.000000e+00 : f32
    %37 = vector.broadcast %cst_12 : f32 to vector<8x96xf32>
    %38 = arith.addf %37, %36 : vector<8x96xf32>
    %39 = arith.divf %37, %38 : vector<8x96xf32>
    %40 = vector.extract_strided_slice %33 {offsets = [0, 96], sizes = [8, 32], strides = [1, 1]} : vector<8x128xf32> to vector<8x32xf32>
    %41 = math.tanh %40 : vector<8x32xf32>
    %42 = vector.extract_strided_slice %39 {offsets = [0, 0], sizes = [8, 32], strides = [1, 1]} : vector<8x96xf32> to vector<8x32xf32>
    %43 = vector.extract_strided_slice %39 {offsets = [0, 32], sizes = [8, 32], strides = [1, 1]} : vector<8x96xf32> to vector<8x32xf32>
    %44 = vector.extract_strided_slice %39 {offsets = [0, 64], sizes = [8, 32], strides = [1, 1]} : vector<8x96xf32> to vector<8x32xf32>
    %45 = arith.mulf %43, %28 : vector<8x32xf32>
    %46 = arith.mulf %42, %41 : vector<8x32xf32>
    %47 = arith.addf %45, %46 : vector<8x32xf32>
    %48 = math.tanh %47 : vector<8x32xf32>
    %49 = arith.mulf %44, %48 : vector<8x32xf32>
    %50 = vector.extract_strided_slice %49 {offsets = [3, 0], sizes = [1, 32], strides = [1, 1]} : vector<8x32xf32> to vector<1x32xf32>
    %51 = vector.extract_strided_slice %9 {offsets = [16, 0], sizes = [8, 128], strides = [1, 1]} : vector<64x128xf32> to vector<8x128xf32>
    %cst_13 = arith.constant dense<0.000000e+00> : vector<8x128xf32>
    %52 = tpu.matmul %49, %0, %cst_13 {dimension_numbers = #tpu.dot_dimension_numbers<[1], [0], [0], [1], [0, 0, 1, 1], [], []>} : vector<8x32xf32>, vector<32x128xf32>, vector<8x128xf32> -> vector<8x128xf32>
    %53 = arith.addf %51, %52 : vector<8x128xf32>
    %54 = vector.extract_strided_slice %53 {offsets = [0, 0], sizes = [8, 96], strides = [1, 1]} : vector<8x128xf32> to vector<8x96xf32>
    %55 = arith.negf %54 : vector<8x96xf32>
    %56 = math.exp %55 : vector<8x96xf32>
    %cst_14 = arith.constant 1.000000e+00 : f32
    %57 = vector.broadcast %cst_14 : f32 to vector<8x96xf32>
    %58 = arith.addf %57, %56 : vector<8x96xf32>
    %59 = arith.divf %57, %58 : vector<8x96xf32>
    %60 = vector.extract_strided_slice %53 {offsets = [0, 96], sizes = [8, 32], strides = [1, 1]} : vector<8x128xf32> to vector<8x32xf32>
    %61 = math.tanh %60 : vector<8x32xf32>
    %62 = vector.extract_strided_slice %59 {offsets = [0, 0], sizes = [8, 32], strides = [1, 1]} : vector<8x96xf32> to vector<8x32xf32>
    %63 = vector.extract_strided_slice %59 {offsets = [0, 32], sizes = [8, 32], strides = [1, 1]} : vector<8x96xf32> to vector<8x32xf32>
    %64 = vector.extract_strided_slice %59 {offsets = [0, 64], sizes = [8, 32], strides = [1, 1]} : vector<8x96xf32> to vector<8x32xf32>
    %65 = arith.mulf %63, %47 : vector<8x32xf32>
    %66 = arith.mulf %62, %61 : vector<8x32xf32>
    %67 = arith.addf %65, %66 : vector<8x32xf32>
    %68 = math.tanh %67 : vector<8x32xf32>
    %69 = arith.mulf %64, %68 : vector<8x32xf32>
    %70 = vector.extract_strided_slice %9 {offsets = [24, 0], sizes = [8, 128], strides = [1, 1]} : vector<64x128xf32> to vector<8x128xf32>
    %cst_15 = arith.constant dense<0.000000e+00> : vector<8x128xf32>
    %71 = tpu.matmul %69, %0, %cst_15 {dimension_numbers = #tpu.dot_dimension_numbers<[1], [0], [0], [1], [0, 0, 1, 1], [], []>} : vector<8x32xf32>, vector<32x128xf32>, vector<8x128xf32> -> vector<8x128xf32>
    %72 = arith.addf %70, %71 : vector<8x128xf32>
    %73 = vector.extract_strided_slice %72 {offsets = [0, 0], sizes = [8, 96], strides = [1, 1]} : vector<8x128xf32> to vector<8x96xf32>
    %74 = arith.negf %73 : vector<8x96xf32>
    %75 = math.exp %74 : vector<8x96xf32>
    %cst_16 = arith.constant 1.000000e+00 : f32
    %76 = vector.broadcast %cst_16 : f32 to vector<8x96xf32>
    %77 = arith.addf %76, %75 : vector<8x96xf32>
    %78 = arith.divf %76, %77 : vector<8x96xf32>
    %79 = vector.extract_strided_slice %72 {offsets = [0, 96], sizes = [8, 32], strides = [1, 1]} : vector<8x128xf32> to vector<8x32xf32>
    %80 = math.tanh %79 : vector<8x32xf32>
    %81 = vector.extract_strided_slice %78 {offsets = [0, 0], sizes = [8, 32], strides = [1, 1]} : vector<8x96xf32> to vector<8x32xf32>
    %82 = vector.extract_strided_slice %78 {offsets = [0, 32], sizes = [8, 32], strides = [1, 1]} : vector<8x96xf32> to vector<8x32xf32>
    %83 = vector.extract_strided_slice %78 {offsets = [0, 64], sizes = [8, 32], strides = [1, 1]} : vector<8x96xf32> to vector<8x32xf32>
    %84 = arith.mulf %82, %67 : vector<8x32xf32>
    %85 = arith.mulf %81, %80 : vector<8x32xf32>
    %86 = arith.addf %84, %85 : vector<8x32xf32>
    %87 = math.tanh %86 : vector<8x32xf32>
    %88 = arith.mulf %83, %87 : vector<8x32xf32>
    %89 = vector.extract_strided_slice %88 {offsets = [3, 0], sizes = [1, 32], strides = [1, 1]} : vector<8x32xf32> to vector<1x32xf32>
    %90 = vector.extract_strided_slice %9 {offsets = [32, 0], sizes = [8, 128], strides = [1, 1]} : vector<64x128xf32> to vector<8x128xf32>
    %cst_17 = arith.constant dense<0.000000e+00> : vector<8x128xf32>
    %91 = tpu.matmul %88, %0, %cst_17 {dimension_numbers = #tpu.dot_dimension_numbers<[1], [0], [0], [1], [0, 0, 1, 1], [], []>} : vector<8x32xf32>, vector<32x128xf32>, vector<8x128xf32> -> vector<8x128xf32>
    %92 = arith.addf %90, %91 : vector<8x128xf32>
    %93 = vector.extract_strided_slice %92 {offsets = [0, 0], sizes = [8, 96], strides = [1, 1]} : vector<8x128xf32> to vector<8x96xf32>
    %94 = arith.negf %93 : vector<8x96xf32>
    %95 = math.exp %94 : vector<8x96xf32>
    %cst_18 = arith.constant 1.000000e+00 : f32
    %96 = vector.broadcast %cst_18 : f32 to vector<8x96xf32>
    %97 = arith.addf %96, %95 : vector<8x96xf32>
    %98 = arith.divf %96, %97 : vector<8x96xf32>
    %99 = vector.extract_strided_slice %92 {offsets = [0, 96], sizes = [8, 32], strides = [1, 1]} : vector<8x128xf32> to vector<8x32xf32>
    %100 = math.tanh %99 : vector<8x32xf32>
    %101 = vector.extract_strided_slice %98 {offsets = [0, 0], sizes = [8, 32], strides = [1, 1]} : vector<8x96xf32> to vector<8x32xf32>
    %102 = vector.extract_strided_slice %98 {offsets = [0, 32], sizes = [8, 32], strides = [1, 1]} : vector<8x96xf32> to vector<8x32xf32>
    %103 = vector.extract_strided_slice %98 {offsets = [0, 64], sizes = [8, 32], strides = [1, 1]} : vector<8x96xf32> to vector<8x32xf32>
    %104 = arith.mulf %102, %86 : vector<8x32xf32>
    %105 = arith.mulf %101, %100 : vector<8x32xf32>
    %106 = arith.addf %104, %105 : vector<8x32xf32>
    %107 = math.tanh %106 : vector<8x32xf32>
    %108 = arith.mulf %103, %107 : vector<8x32xf32>
    %109 = vector.extract_strided_slice %9 {offsets = [40, 0], sizes = [8, 128], strides = [1, 1]} : vector<64x128xf32> to vector<8x128xf32>
    %cst_19 = arith.constant dense<0.000000e+00> : vector<8x128xf32>
    %110 = tpu.matmul %108, %0, %cst_19 {dimension_numbers = #tpu.dot_dimension_numbers<[1], [0], [0], [1], [0, 0, 1, 1], [], []>} : vector<8x32xf32>, vector<32x128xf32>, vector<8x128xf32> -> vector<8x128xf32>
    %111 = arith.addf %109, %110 : vector<8x128xf32>
    %112 = vector.extract_strided_slice %111 {offsets = [0, 0], sizes = [8, 96], strides = [1, 1]} : vector<8x128xf32> to vector<8x96xf32>
    %113 = arith.negf %112 : vector<8x96xf32>
    %114 = math.exp %113 : vector<8x96xf32>
    %cst_20 = arith.constant 1.000000e+00 : f32
    %115 = vector.broadcast %cst_20 : f32 to vector<8x96xf32>
    %116 = arith.addf %115, %114 : vector<8x96xf32>
    %117 = arith.divf %115, %116 : vector<8x96xf32>
    %118 = vector.extract_strided_slice %111 {offsets = [0, 96], sizes = [8, 32], strides = [1, 1]} : vector<8x128xf32> to vector<8x32xf32>
    %119 = math.tanh %118 : vector<8x32xf32>
    %120 = vector.extract_strided_slice %117 {offsets = [0, 0], sizes = [8, 32], strides = [1, 1]} : vector<8x96xf32> to vector<8x32xf32>
    %121 = vector.extract_strided_slice %117 {offsets = [0, 32], sizes = [8, 32], strides = [1, 1]} : vector<8x96xf32> to vector<8x32xf32>
    %122 = vector.extract_strided_slice %117 {offsets = [0, 64], sizes = [8, 32], strides = [1, 1]} : vector<8x96xf32> to vector<8x32xf32>
    %123 = arith.mulf %121, %106 : vector<8x32xf32>
    %124 = arith.mulf %120, %119 : vector<8x32xf32>
    %125 = arith.addf %123, %124 : vector<8x32xf32>
    %126 = math.tanh %125 : vector<8x32xf32>
    %127 = arith.mulf %122, %126 : vector<8x32xf32>
    %128 = vector.extract_strided_slice %127 {offsets = [3, 0], sizes = [1, 32], strides = [1, 1]} : vector<8x32xf32> to vector<1x32xf32>
    %129 = vector.extract_strided_slice %9 {offsets = [48, 0], sizes = [8, 128], strides = [1, 1]} : vector<64x128xf32> to vector<8x128xf32>
    %cst_21 = arith.constant dense<0.000000e+00> : vector<8x128xf32>
    %130 = tpu.matmul %127, %0, %cst_21 {dimension_numbers = #tpu.dot_dimension_numbers<[1], [0], [0], [1], [0, 0, 1, 1], [], []>} : vector<8x32xf32>, vector<32x128xf32>, vector<8x128xf32> -> vector<8x128xf32>
    %131 = arith.addf %129, %130 : vector<8x128xf32>
    %132 = vector.extract_strided_slice %131 {offsets = [0, 0], sizes = [8, 96], strides = [1, 1]} : vector<8x128xf32> to vector<8x96xf32>
    %133 = arith.negf %132 : vector<8x96xf32>
    %134 = math.exp %133 : vector<8x96xf32>
    %cst_22 = arith.constant 1.000000e+00 : f32
    %135 = vector.broadcast %cst_22 : f32 to vector<8x96xf32>
    %136 = arith.addf %135, %134 : vector<8x96xf32>
    %137 = arith.divf %135, %136 : vector<8x96xf32>
    %138 = vector.extract_strided_slice %131 {offsets = [0, 96], sizes = [8, 32], strides = [1, 1]} : vector<8x128xf32> to vector<8x32xf32>
    %139 = math.tanh %138 : vector<8x32xf32>
    %140 = vector.extract_strided_slice %137 {offsets = [0, 0], sizes = [8, 32], strides = [1, 1]} : vector<8x96xf32> to vector<8x32xf32>
    %141 = vector.extract_strided_slice %137 {offsets = [0, 32], sizes = [8, 32], strides = [1, 1]} : vector<8x96xf32> to vector<8x32xf32>
    %142 = vector.extract_strided_slice %137 {offsets = [0, 64], sizes = [8, 32], strides = [1, 1]} : vector<8x96xf32> to vector<8x32xf32>
    %143 = arith.mulf %141, %125 : vector<8x32xf32>
    %144 = arith.mulf %140, %139 : vector<8x32xf32>
    %145 = arith.addf %143, %144 : vector<8x32xf32>
    %146 = math.tanh %145 : vector<8x32xf32>
    %147 = arith.mulf %142, %146 : vector<8x32xf32>
    %148 = vector.extract_strided_slice %9 {offsets = [56, 0], sizes = [8, 128], strides = [1, 1]} : vector<64x128xf32> to vector<8x128xf32>
    %cst_23 = arith.constant dense<0.000000e+00> : vector<8x128xf32>
    %149 = tpu.matmul %147, %0, %cst_23 {dimension_numbers = #tpu.dot_dimension_numbers<[1], [0], [0], [1], [0, 0, 1, 1], [], []>} : vector<8x32xf32>, vector<32x128xf32>, vector<8x128xf32> -> vector<8x128xf32>
    %150 = arith.addf %148, %149 : vector<8x128xf32>
    %151 = vector.extract_strided_slice %150 {offsets = [0, 0], sizes = [8, 96], strides = [1, 1]} : vector<8x128xf32> to vector<8x96xf32>
    %152 = arith.negf %151 : vector<8x96xf32>
    %153 = math.exp %152 : vector<8x96xf32>
    %cst_24 = arith.constant 1.000000e+00 : f32
    %154 = vector.broadcast %cst_24 : f32 to vector<8x96xf32>
    %155 = arith.addf %154, %153 : vector<8x96xf32>
    %156 = arith.divf %154, %155 : vector<8x96xf32>
    %157 = vector.extract_strided_slice %150 {offsets = [0, 96], sizes = [8, 32], strides = [1, 1]} : vector<8x128xf32> to vector<8x32xf32>
    %158 = math.tanh %157 : vector<8x32xf32>
    %159 = vector.extract_strided_slice %156 {offsets = [0, 0], sizes = [8, 32], strides = [1, 1]} : vector<8x96xf32> to vector<8x32xf32>
    %160 = vector.extract_strided_slice %156 {offsets = [0, 32], sizes = [8, 32], strides = [1, 1]} : vector<8x96xf32> to vector<8x32xf32>
    %161 = vector.extract_strided_slice %156 {offsets = [0, 64], sizes = [8, 32], strides = [1, 1]} : vector<8x96xf32> to vector<8x32xf32>
    %162 = arith.mulf %160, %145 : vector<8x32xf32>
    %163 = arith.mulf %159, %158 : vector<8x32xf32>
    %164 = arith.addf %162, %163 : vector<8x32xf32>
    %165 = math.tanh %164 : vector<8x32xf32>
    %166 = arith.mulf %161, %165 : vector<8x32xf32>
    %167 = vector.extract_strided_slice %166 {offsets = [3, 0], sizes = [1, 32], strides = [1, 1]} : vector<8x32xf32> to vector<1x32xf32>
    %168 = tpu.concatenate %50, %89, %128, %167 in 0 : vector<1x32xf32>, vector<1x32xf32>, vector<1x32xf32>, vector<1x32xf32> -> vector<4x32xf32>
    %169 = vector.extract_strided_slice %3 {offsets = [0, 0], sizes = [1, 32], strides = [1, 1]} : vector<1x128xf32> to vector<1x32xf32>
    %170 = vector.broadcast %169 : vector<1x32xf32> to vector<4x32xf32>
    %171 = arith.mulf %168, %170 : vector<4x32xf32>
    %cst_25 = arith.constant dense<0.000000e+00> : vector<4xf32>
    %172 = vector.multi_reduction <add>, %171, %cst_25 [1] : vector<4x32xf32> to vector<4xf32>
    %173 = vector.shape_cast %172 : vector<4xf32> to vector<4x1xf32>
    %174 = vector.broadcast %5 : vector<1x1xf32> to vector<4x1xf32>
    %175 = arith.addf %173, %174 : vector<4x1xf32>
    %c0_26 = arith.constant 0 : index
    %c0_27 = arith.constant 0 : index
    %176 = vector.load %arg2[%c0_26, %c0_27] : memref<4x1xf32, #tpu.memory_space<vmem>>, vector<4x1xf32>
    tpu.vector_store %arg2[%c0_26, %c0_27], %175 {strides = array<i32>} : memref<4x1xf32, #tpu.memory_space<vmem>>, vector<4x1xf32>,
    return
  }
}

</mosaic_0001>

<llo_original>
// kernel: env_lstm_forward.1
$region0: #{env_lstm_forward.1}
  #allocation0 [shape = 'u32[]', space=smem, size = 0x4, offset = 0x4, fixed_abs, tag = 'smem constant byte address 0x4 - core index']
  #allocation1 [shape = 'u32[144,128]{1,0:T(1,128)}', space=vmem, size = 0x12000, scoped, tag = 'internal scratch']
  %s0 = inlined_call_operand.vmem [shape: f32[64,4], index: 0, kind: input, shape index: {}]
  %s1 = inlined_call_operand.vmem [shape: f32[40,128], index: 1, kind: input, shape index: {}]
  %s2 = inlined_call_operand.vmem [shape: f32[4,1], index: 2, kind: output, shape index: {}]
  %s3 = sld [smem:[#allocation0]]
  $region18: #{env_lstm_forward.1} parent=0
    _
  %s5 = ssub.s32 1, %s3
  %s6 = scalar_select 0, %s5, %s3
  // Predicated region
  $region2: #{env_lstm_forward.1} parent=0 // pred_check
    _
  $region3: #{env_lstm_forward.1} parent=0 // pred_check_branch
    %8 = sbr.rel (0) target = $region5
  $region4: #{env_lstm_forward.1} parent=0 // pred_region
    _
  $region5: #{env_lstm_forward.1} parent=0 // pred_fallthru
    _
  // Predicated region
  $region6: #{env_lstm_forward.1} parent=0 // pred_check
    _
  $region7: #{env_lstm_forward.1} parent=0 // pred_check_branch
    %10 = sbr.rel (0) target = $region9
  $region8: #{env_lstm_forward.1} parent=0 // pred_region
    _
  $region9: #{env_lstm_forward.1} parent=0 // pred_fallthru
    _
  %v11 = vld [vmem:[%s1] sm:$0xff]
  %v12 = vld [vmem:[%s1 + $0x8] sm:$0xff]
  %v13 = vld [vmem:[%s1 + $0x10] sm:$0xff]
  %v14 = vld [vmem:[%s1 + $0x18] sm:$0xff]
  %v15 = vld [vmem:[%s1 + $0x20] sm:$0xf]
  %v16 = vld [vmem:[%s1 + $0x24] sm:$0x1]
  %v17 = vld [vmem:[%s1 + $0x25] sm:$0x1]
  %v18 = vld [vmem:[%s1 + $0x26] sm:$0x1]
  %v19 = vld [vmem:[%s0] sm:$0xff]
  %v20 = vld [vmem:[%s0 + $0x8] sm:$0xff]
  %v21 = vld [vmem:[%s0 + $0x10] sm:$0xff]
  %v22 = vld [vmem:[%s0 + $0x18] sm:$0xff]
  %v23 = vld [vmem:[%s0 + $0x20] sm:$0xff]
  %v24 = vld [vmem:[%s0 + $0x28] sm:$0xff]
  %v25 = vld [vmem:[%s0 + $0x30] sm:$0xff]
  %v26 = vld [vmem:[%s0 + $0x38] sm:$0xff]
  %v27 = vlaneseq
  %v28 = vshrl.u32 %v27, 7
  %v29 = vsub.s32 0, %v28
  %v30 = vrot.slane %v16, %v29
  %vm31 = vcmask 31744
  %v33 = vsel %vm31, %v19, 0
  %v36 = vsel %vm31, %v20, 0
  %v39 = vsel %vm31, %v21, 0
  %v42 = vsel %vm31, %v22, 0
  %v45 = vsel %vm31, %v23, 0
  %v48 = vsel %vm31, %v24, 0
  %v51 = vsel %vm31, %v25, 0
  %v54 = vsel %vm31, %v26, 0
  %vm56 = vcmask 1043456
  %v58 = vsel %vm56, %v15, 0
  %60 = vmatprep.subr.mxu0 0.0
  %61 = vmatpush1.msra.mxu0 %v58
  %62 = vmatprep.subr.mxu0 0.0
  %63 = vmatpush1.msra.mxu0 0.0
  %64 = vmatprep.subr.mxu0 0.0
  %65 = vmatpush1.msra.mxu0 0.0
  %66 = vmatprep.subr.mxu0 0.0
  %67 = vmatpush1.msra.mxu0 0.0
  %68 = vmatprep.subr.mxu0 0.0
  %69 = vmatpush1.msra.mxu0 0.0
  %70 = vmatprep.subr.mxu0 0.0
  %71 = vmatpush1.msra.mxu0 0.0
  %72 = vmatprep.subr.mxu0 0.0
  %73 = vmatpush1.msra.mxu0 0.0
  %74 = vmatprep.subr.mxu0 0.0
  %75 = vmatpush1.msra.mxu0 0.0
  %76 = vmatprep.subr.mxu0 0.0
  %77 = vmatpush1.msra.mxu0 0.0
  %78 = vmatprep.subr.mxu0 0.0
  %79 = vmatpush1.msra.mxu0 0.0
  %80 = vmatprep.subr.mxu0 0.0
  %81 = vmatpush1.msra.mxu0 0.0
  %82 = vmatprep.subr.mxu0 0.0
  %83 = vmatpush1.msra.mxu0 0.0
  %84 = vmatprep.subr.mxu0 0.0
  %85 = vmatpush1.msra.mxu0 0.0
  %86 = vmatprep.subr.mxu0 0.0
  %87 = vmatpush1.msra.mxu0 0.0
  %88 = vmatprep.subr.mxu0 0.0
  %89 = vmatpush1.msra.mxu0 0.0
  %90 = vmatprep.subr.mxu0 0.0
  %91 = vmatpush1.msra.mxu0 0.0
  %92 = vmatprep.subr.mxu0 0.0
  %93 = vmatpush1.msra.mxu0 0.0
  %94 = vmatprep.subr.mxu0 0.0
  %95 = vmatpush1.msra.mxu0 0.0
  %96 = vmatprep.subr.mxu0 0.0
  %97 = vmatpush1.msra.mxu0 0.0
  %98 = vmatprep.subr.mxu0 0.0
  %99 = vmatpush1.msra.mxu0 0.0
  %100 = vmatprep.subr.mxu0 0.0
  %101 = vmatpush1.msra.mxu0 0.0
  %102 = vmatprep.subr.mxu0 0.0
  %103 = vmatpush1.msra.mxu0 0.0
  %104 = vmatprep.subr.mxu0 0.0
  %105 = vmatpush1.msra.mxu0 0.0
  %106 = vmatprep.subr.mxu0 0.0
  %107 = vmatpush1.msra.mxu0 0.0
  %108 = vmatprep.subr.mxu0 0.0
  %109 = vmatpush1.msra.mxu0 0.0
  %110 = vmatprep.subr.mxu0 0.0
  %111 = vmatpush1.msra.mxu0 0.0
  %112 = vmatprep.subr.mxu0 0.0
  %113 = vmatpush1.msra.mxu0 0.0
  %114 = vmatprep.subr.mxu0 0.0
  %115 = vmatpush1.msra.mxu0 0.0
  %116 = vmatprep.subr.mxu0 0.0
  %117 = vmatpush1.msra.mxu0 0.0
  %118 = vmatprep.subr.mxu0 0.0
  %119 = vmatpush1.msra.mxu0 0.0
  %120 = vmatprep.subr.mxu0 0.0
  %121 = vmatpush1.msra.mxu0 0.0
  %122 = vmatprep.subr.mxu0 0.0
  %123 = vmatpush1.msra.mxu0 0.0
  %124 = vmatprep.mubr.f32.mxu0 0.0
  %125 = vmatmul.mubr.f32.gmra.mrb[0].mxu0 %v33
  %v126 = vpop.f32.mrb[0].mxu0
  %v127 = vadd.f32 %v30, %v126
  %v128 = vpop.f32.mrb[0].mxu0
  %129 = vmatprep.mubr.f32.mxu0 0.0
  %130 = vmatmul.mubr.f32.gmra.mrb[0].mxu0 %v36
  %v131 = vpop.f32.mrb[0].mxu0
  %v132 = vadd.f32 %v30, %v131
  %v133 = vpop.f32.mrb[0].mxu0
  %134 = vmatprep.mubr.f32.mxu0 0.0
  %135 = vmatmul.mubr.f32.gmra.mrb[0].mxu0 %v39
  %v136 = vpop.f32.mrb[0].mxu0
  %v137 = vadd.f32 %v30, %v136
  %v138 = vpop.f32.mrb[0].mxu0
  %139 = vmatprep.mubr.f32.mxu0 0.0
  %140 = vmatmul.mubr.f32.gmra.mrb[0].mxu0 %v42
  %v141 = vpop.f32.mrb[0].mxu0
  %v142 = vadd.f32 %v30, %v141
  %v143 = vpop.f32.mrb[0].mxu0
  %144 = vmatprep.mubr.f32.mxu0 0.0
  %145 = vmatmul.mubr.f32.gmra.mrb[0].mxu0 %v45
  %v146 = vpop.f32.mrb[0].mxu0
  %v147 = vadd.f32 %v30, %v146
  %v148 = vpop.f32.mrb[0].mxu0
  %149 = vmatprep.mubr.f32.mxu0 0.0
  %150 = vmatmul.mubr.f32.gmra.mrb[0].mxu0 %v48
  %v151 = vpop.f32.mrb[0].mxu0
  %v152 = vadd.f32 %v30, %v151
  %v153 = vpop.f32.mrb[0].mxu0
  %154 = vmatprep.mubr.f32.mxu0 0.0
  %155 = vmatmul.mubr.f32.gmra.mrb[0].mxu0 %v51
  %v156 = vpop.f32.mrb[0].mxu0
  %v157 = vadd.f32 %v30, %v156
  %v158 = vpop.f32.mrb[0].mxu0
  %159 = vmatprep.mubr.f32.mxu0 0.0
  %160 = vmatmul.mubr.f32.gmra.mrb[0].mxu0 %v54
  %v161 = vpop.f32.mrb[0].mxu0
  %v162 = vadd.f32 %v30, %v161
  %v163 = vpop.f32.mrb[0].mxu0
  %164 = vdwg.mxu0
  %vm165 = vcmask 261120
  %v167 = vsel %vm165, 0.0, 0
  %169 = vmatprep.subr.mxu0 0.0
  %170 = vmatpush1.msra.mxu0 %v11
  %171 = vmatprep.subr.mxu0 0.0
  %172 = vmatpush1.msra.mxu0 %v12
  %173 = vmatprep.subr.mxu0 0.0
  %174 = vmatpush1.msra.mxu0 %v13
  %175 = vmatprep.subr.mxu0 0.0
  %176 = vmatpush1.msra.mxu0 %v14
  %177 = vmatprep.subr.mxu0 0.0
  %178 = vmatpush1.msra.mxu0 0.0
  %179 = vmatprep.subr.mxu0 0.0
  %180 = vmatpush1.msra.mxu0 0.0
  %181 = vmatprep.subr.mxu0 0.0
  %182 = vmatpush1.msra.mxu0 0.0
  %183 = vmatprep.subr.mxu0 0.0
  %184 = vmatpush1.msra.mxu0 0.0
  %185 = vmatprep.subr.mxu0 0.0
  %186 = vmatpush1.msra.mxu0 0.0
  %187 = vmatprep.subr.mxu0 0.0
  %188 = vmatpush1.msra.mxu0 0.0
  %189 = vmatprep.subr.mxu0 0.0
  %190 = vmatpush1.msra.mxu0 0.0
  %191 = vmatprep.subr.mxu0 0.0
  %192 = vmatpush1.msra.mxu0 0.0
  %193 = vmatprep.subr.mxu0 0.0
  %194 = vmatpush1.msra.mxu0 0.0
  %195 = vmatprep.subr.mxu0 0.0
  %196 = vmatpush1.msra.mxu0 0.0
  %197 = vmatprep.subr.mxu0 0.0
  %198 = vmatpush1.msra.mxu0 0.0
  %199 = vmatprep.subr.mxu0 0.0
  %200 = vmatpush1.msra.mxu0 0.0
  %201 = vmatprep.subr.mxu0 0.0
  %202 = vmatpush1.msra.mxu0 0.0
  %203 = vmatprep.subr.mxu0 0.0
  %204 = vmatpush1.msra.mxu0 0.0
  %205 = vmatprep.subr.mxu0 0.0
  %206 = vmatpush1.msra.mxu0 0.0
  %207 = vmatprep.subr.mxu0 0.0
  %208 = vmatpush1.msra.mxu0 0.0
  %209 = vmatprep.subr.mxu0 0.0
  %210 = vmatpush1.msra.mxu0 0.0
  %211 = vmatprep.subr.mxu0 0.0
  %212 = vmatpush1.msra.mxu0 0.0
  %213 = vmatprep.subr.mxu0 0.0
  %214 = vmatpush1.msra.mxu0 0.0
  %215 = vmatprep.subr.mxu0 0.0
  %216 = vmatpush1.msra.mxu0 0.0
  %217 = vmatprep.subr.mxu0 0.0
  %218 = vmatpush1.msra.mxu0 0.0
  %219 = vmatprep.subr.mxu0 0.0
  %220 = vmatpush1.msra.mxu0 0.0
  %221 = vmatprep.subr.mxu0 0.0
  %222 = vmatpush1.msra.mxu0 0.0
  %223 = vmatprep.subr.mxu0 0.0
  %224 = vmatpush1.msra.mxu0 0.0
  %225 = vmatprep.subr.mxu0 0.0
  %226 = vmatpush1.msra.mxu0 0.0
  %227 = vmatprep.subr.mxu0 0.0
  %228 = vmatpush1.msra.mxu0 0.0
  %229 = vmatprep.subr.mxu0 0.0
  %230 = vmatpush1.msra.mxu0 0.0
  %231 = vmatprep.subr.mxu0 0.0
  %232 = vmatpush1.msra.mxu0 0.0
  %233 = vmatprep.mubr.f32.mxu0 0.0
  %234 = vmatmul.mubr.f32.gmra.mrb[0].mxu0 %v167
  %v235 = vpop.f32.mrb[0].mxu0
  %v236 = vadd.f32 0.0, %v235
  %v237 = vpop.f32.mrb[0].mxu0
  %238 = vdwg.mxu0
  %v239 = vadd.f32 %v127, %v236
  %v240 = vxor.u32 %v239, 2147483648
  %v241 = vmul.f32 %v240, 1.442695
  %v242 = vpow.pop %v241
  %v243 = vadd.f32 %v242, 1.0
  %v244 = vrcp.pop %v243
  %v245 = vmul.f32 1.0, %v244
  %v246 = vtanh.pop %v239
  %v247 = vmul.f32 %v245, 0.0
  %249 = vrot.lane.b32.xlu0 %v246, 32
  %v250 = vpop.permute.xlu0 %249
  %v252 = vmul.f32 %v245, %v250
  %254 = vrot.lane.b32.xlu0 %v252, 32
  %v255 = vpop.permute.xlu0 %254
  %v257 = vadd.f32 %v247, %v255
  %v258 = vtanh.pop %v257
  %260 = vrot.lane.b32.xlu0 %v258, 32
  %v261 = vpop.permute.xlu0 %260
  %v263 = vmul.f32 %v245, %v261
  %265 = vrot.lane.b32.xlu0 %v263, 64
  %v266 = vpop.permute.xlu0 %265
  %v267 = vsel %vm165, %v266, 0
  %269 = vmatprep.subr.mxu0 0.0
  %270 = vmatpush1.msra.mxu0 %v11
  %271 = vmatprep.subr.mxu0 0.0
  %272 = vmatpush1.msra.mxu0 %v12
  %273 = vmatprep.subr.mxu0 0.0
  %274 = vmatpush1.msra.mxu0 %v13
  %275 = vmatprep.subr.mxu0 0.0
  %276 = vmatpush1.msra.mxu0 %v14
  %277 = vmatprep.subr.mxu0 0.0
  %278 = vmatpush1.msra.mxu0 0.0
  %279 = vmatprep.subr.mxu0 0.0
  %280 = vmatpush1.msra.mxu0 0.0
  %281 = vmatprep.subr.mxu0 0.0
  %282 = vmatpush1.msra.mxu0 0.0
  %283 = vmatprep.subr.mxu0 0.0
  %284 = vmatpush1.msra.mxu0 0.0
  %285 = vmatprep.subr.mxu0 0.0
  %286 = vmatpush1.msra.mxu0 0.0
  %287 = vmatprep.subr.mxu0 0.0
  %288 = vmatpush1.msra.mxu0 0.0
  %289 = vmatprep.subr.mxu0 0.0
  %290 = vmatpush1.msra.mxu0 0.0
  %291 = vmatprep.subr.mxu0 0.0
  %292 = vmatpush1.msra.mxu0 0.0
  %293 = vmatprep.subr.mxu0 0.0
  %294 = vmatpush1.msra.mxu0 0.0
  %295 = vmatprep.subr.mxu0 0.0
  %296 = vmatpush1.msra.mxu0 0.0
  %297 = vmatprep.subr.mxu0 0.0
  %298 = vmatpush1.msra.mxu0 0.0
  %299 = vmatprep.subr.mxu0 0.0
  %300 = vmatpush1.msra.mxu0 0.0
  %301 = vmatprep.subr.mxu0 0.0
  %302 = vmatpush1.msra.mxu0 0.0
  %303 = vmatprep.subr.mxu0 0.0
  %304 = vmatpush1.msra.mxu0 0.0
  %305 = vmatprep.subr.mxu0 0.0
  %306 = vmatpush1.msra.mxu0 0.0
  %307 = vmatprep.subr.mxu0 0.0
  %308 = vmatpush1.msra.mxu0 0.0
  %309 = vmatprep.subr.mxu0 0.0
  %310 = vmatpush1.msra.mxu0 0.0
  %311 = vmatprep.subr.mxu0 0.0
  %312 = vmatpush1.msra.mxu0 0.0
  %313 = vmatprep.subr.mxu0 0.0
  %314 = vmatpush1.msra.mxu0 0.0
  %315 = vmatprep.subr.mxu0 0.0
  %316 = vmatpush1.msra.mxu0 0.0
  %317 = vmatprep.subr.mxu0 0.0
  %318 = vmatpush1.msra.mxu0 0.0
  %319 = vmatprep.subr.mxu0 0.0
  %320 = vmatpush1.msra.mxu0 0.0
  %321 = vmatprep.subr.mxu0 0.0
  %322 = vmatpush1.msra.mxu0 0.0
  %323 = vmatprep.subr.mxu0 0.0
  %324 = vmatpush1.msra.mxu0 0.0
  %325 = vmatprep.subr.mxu0 0.0
  %326 = vmatpush1.msra.mxu0 0.0
  %327 = vmatprep.subr.mxu0 0.0
  %328 = vmatpush1.msra.mxu0 0.0
  %329 = vmatprep.subr.mxu0 0.0
  %330 = vmatpush1.msra.mxu0 0.0
  %331 = vmatprep.subr.mxu0 0.0
  %332 = vmatpush1.msra.mxu0 0.0
  %333 = vmatprep.mubr.f32.mxu0 0.0
  %334 = vmatmul.mubr.f32.gmra.mrb[0].mxu0 %v267
  %v335 = vpop.f32.mrb[0].mxu0
  %v336 = vadd.f32 0.0, %v335
  %v337 = vpop.f32.mrb[0].mxu0
  %338 = vdwg.mxu0
  %v339 = vadd.f32 %v132, %v336
  %v340 = vxor.u32 %v339, 2147483648
  %v341 = vmul.f32 %v340, 1.442695
  %v342 = vpow.pop %v341
  %v343 = vadd.f32 %v342, 1.0
  %v344 = vrcp.pop %v343
  %v345 = vmul.f32 1.0, %v344
  %v346 = vtanh.pop %v339
  %v347 = vmul.f32 %v345, %v257
  %349 = vrot.lane.b32.xlu0 %v346, 32
  %v350 = vpop.permute.xlu0 %349
  %v352 = vmul.f32 %v345, %v350
  %354 = vrot.lane.b32.xlu0 %v352, 32
  %v355 = vpop.permute.xlu0 %354
  %v357 = vadd.f32 %v347, %v355
  %v358 = vtanh.pop %v357
  %360 = vrot.lane.b32.xlu0 %v358, 32
  %v361 = vpop.permute.xlu0 %360
  %v363 = vmul.f32 %v345, %v361
  %365 = vrot.lane.b32.xlu0 %v363, 64
  %v366 = vpop.permute.xlu0 %365
  %v367 = vsel %vm165, %v366, 0
  %369 = vmatprep.subr.mxu0 0.0
  %370 = vmatpush1.msra.mxu0 %v11
  %371 = vmatprep.subr.mxu0 0.0
  %372 = vmatpush1.msra.mxu0 %v12
  %373 = vmatprep.subr.mxu0 0.0
  %374 = vmatpush1.msra.mxu0 %v13
  %375 = vmatprep.subr.mxu0 0.0
  %376 = vmatpush1.msra.mxu0 %v14
  %377 = vmatprep.subr.mxu0 0.0
  %378 = vmatpush1.msra.mxu0 0.0
  %379 = vmatprep.subr.mxu0 0.0
  %380 = vmatpush1.msra.mxu0 0.0
  %381 = vmatprep.subr.mxu0 0.0
  %382 = vmatpush1.msra.mxu0 0.0
  %383 = vmatprep.subr.mxu0 0.0
  %384 = vmatpush1.msra.mxu0 0.0
  %385 = vmatprep.subr.mxu0 0.0
  %386 = vmatpush1.msra.mxu0 0.0
  %387 = vmatprep.subr.mxu0 0.0
  %388 = vmatpush1.msra.mxu0 0.0
  %389 = vmatprep.subr.mxu0 0.0
  %390 = vmatpush1.msra.mxu0 0.0
  %391 = vmatprep.subr.mxu0 0.0
  %392 = vmatpush1.msra.mxu0 0.0
  %393 = vmatprep.subr.mxu0 0.0
  %394 = vmatpush1.msra.mxu0 0.0
  %395 = vmatprep.subr.mxu0 0.0
  %396 = vmatpush1.msra.mxu0 0.0
  %397 = vmatprep.subr.mxu0 0.0
  %398 = vmatpush1.msra.mxu0 0.0
  %399 = vmatprep.subr.mxu0 0.0
  %400 = vmatpush1.msra.mxu0 0.0
  %401 = vmatprep.subr.mxu0 0.0
  %402 = vmatpush1.msra.mxu0 0.0
  %403 = vmatprep.subr.mxu0 0.0
  %404 = vmatpush1.msra.mxu0 0.0
  %405 = vmatprep.subr.mxu0 0.0
  %406 = vmatpush1.msra.mxu0 0.0
  %407 = vmatprep.subr.mxu0 0.0
  %408 = vmatpush1.msra.mxu0 0.0
  %409 = vmatprep.subr.mxu0 0.0
  %410 = vmatpush1.msra.mxu0 0.0
  %411 = vmatprep.subr.mxu0 0.0
  %412 = vmatpush1.msra.mxu0 0.0
  %413 = vmatprep.subr.mxu0 0.0
  %414 = vmatpush1.msra.mxu0 0.0
  %415 = vmatprep.subr.mxu0 0.0
  %416 = vmatpush1.msra.mxu0 0.0
  %417 = vmatprep.subr.mxu0 0.0
  %418 = vmatpush1.msra.mxu0 0.0
  %419 = vmatprep.subr.mxu0 0.0
  %420 = vmatpush1.msra.mxu0 0.0
  %421 = vmatprep.subr.mxu0 0.0
  %422 = vmatpush1.msra.mxu0 0.0
  %423 = vmatprep.subr.mxu0 0.0
  %424 = vmatpush1.msra.mxu0 0.0
  %425 = vmatprep.subr.mxu0 0.0
  %426 = vmatpush1.msra.mxu0 0.0
  %427 = vmatprep.subr.mxu0 0.0
  %428 = vmatpush1.msra.mxu0 0.0
  %429 = vmatprep.subr.mxu0 0.0
  %430 = vmatpush1.msra.mxu0 0.0
  %431 = vmatprep.subr.mxu0 0.0
  %432 = vmatpush1.msra.mxu0 0.0
  %433 = vmatprep.mubr.f32.mxu0 0.0
  %434 = vmatmul.mubr.f32.gmra.mrb[0].mxu0 %v367
  %v435 = vpop.f32.mrb[0].mxu0
  %v436 = vadd.f32 0.0, %v435
  %v437 = vpop.f32.mrb[0].mxu0
  %438 = vdwg.mxu0
  %v439 = vadd.f32 %v137, %v436
  %v440 = vxor.u32 %v439, 2147483648
  %v441 = vmul.f32 %v440, 1.442695
  %v442 = vpow.pop %v441
  %v443 = vadd.f32 %v442, 1.0
  %v444 = vrcp.pop %v443
  %v445 = vmul.f32 1.0, %v444
  %v446 = vtanh.pop %v439
  %v447 = vmul.f32 %v445, %v357
  %449 = vrot.lane.b32.xlu0 %v446, 32
  %v450 = vpop.permute.xlu0 %449
  %v452 = vmul.f32 %v445, %v450
  %454 = vrot.lane.b32.xlu0 %v452, 32
  %v455 = vpop.permute.xlu0 %454
  %v457 = vadd.f32 %v447, %v455
  %v458 = vtanh.pop %v457
  %460 = vrot.lane.b32.xlu0 %v458, 32
  %v461 = vpop.permute.xlu0 %460
  %v463 = vmul.f32 %v445, %v461
  %465 = vrot.lane.b32.xlu0 %v463, 64
  %v466 = vpop.permute.xlu0 %465
  %v467 = vsel %vm165, %v466, 0
  %469 = vmatprep.subr.mxu0 0.0
  %470 = vmatpush1.msra.mxu0 %v11
  %471 = vmatprep.subr.mxu0 0.0
  %472 = vmatpush1.msra.mxu0 %v12
  %473 = vmatprep.subr.mxu0 0.0
  %474 = vmatpush1.msra.mxu0 %v13
  %475 = vmatprep.subr.mxu0 0.0
  %476 = vmatpush1.msra.mxu0 %v14
  %477 = vmatprep.subr.mxu0 0.0
  %478 = vmatpush1.msra.mxu0 0.0
  %479 = vmatprep.subr.mxu0 0.0
  %480 = vmatpush1.msra.mxu0 0.0
  %481 = vmatprep.subr.mxu0 0.0
  %482 = vmatpush1.msra.mxu0 0.0
  %483 = vmatprep.subr.mxu0 0.0
  %484 = vmatpush1.msra.mxu0 0.0
  %485 = vmatprep.subr.mxu0 0.0
  %486 = vmatpush1.msra.mxu0 0.0
  %487 = vmatprep.subr.mxu0 0.0
  %488 = vmatpush1.msra.mxu0 0.0
  %489 = vmatprep.subr.mxu0 0.0
  %490 = vmatpush1.msra.mxu0 0.0
  %491 = vmatprep.subr.mxu0 0.0
  %492 = vmatpush1.msra.mxu0 0.0
  %493 = vmatprep.subr.mxu0 0.0
  %494 = vmatpush1.msra.mxu0 0.0
  %495 = vmatprep.subr.mxu0 0.0
  %496 = vmatpush1.msra.mxu0 0.0
  %497 = vmatprep.subr.mxu0 0.0
  %498 = vmatpush1.msra.mxu0 0.0
  %499 = vmatprep.subr.mxu0 0.0
  %500 = vmatpush1.msra.mxu0 0.0
  %501 = vmatprep.subr.mxu0 0.0
  %502 = vmatpush1.msra.mxu0 0.0
  %503 = vmatprep.subr.mxu0 0.0
  %504 = vmatpush1.msra.mxu0 0.0
  %505 = vmatprep.subr.mxu0 0.0
  %506 = vmatpush1.msra.mxu0 0.0
  %507 = vmatprep.subr.mxu0 0.0
  %508 = vmatpush1.msra.mxu0 0.0
  %509 = vmatprep.subr.mxu0 0.0
  %510 = vmatpush1.msra.mxu0 0.0
  %511 = vmatprep.subr.mxu0 0.0
  %512 = vmatpush1.msra.mxu0 0.0
  %513 = vmatprep.subr.mxu0 0.0
  %514 = vmatpush1.msra.mxu0 0.0
  %515 = vmatprep.subr.mxu0 0.0
  %516 = vmatpush1.msra.mxu0 0.0
  %517 = vmatprep.subr.mxu0 0.0
  %518 = vmatpush1.msra.mxu0 0.0
  %519 = vmatprep.subr.mxu0 0.0
  %520 = vmatpush1.msra.mxu0 0.0
  %521 = vmatprep.subr.mxu0 0.0
  %522 = vmatpush1.msra.mxu0 0.0
  %523 = vmatprep.subr.mxu0 0.0
  %524 = vmatpush1.msra.mxu0 0.0
  %525 = vmatprep.subr.mxu0 0.0
  %526 = vmatpush1.msra.mxu0 0.0
  %527 = vmatprep.subr.mxu0 0.0
  %528 = vmatpush1.msra.mxu0 0.0
  %529 = vmatprep.subr.mxu0 0.0
  %530 = vmatpush1.msra.mxu0 0.0
  %531 = vmatprep.subr.mxu0 0.0
  %532 = vmatpush1.msra.mxu0 0.0
  %533 = vmatprep.mubr.f32.mxu0 0.0
  %534 = vmatmul.mubr.f32.gmra.mrb[0].mxu0 %v467
  %v535 = vpop.f32.mrb[0].mxu0
  %v536 = vadd.f32 0.0, %v535
  %v537 = vpop.f32.mrb[0].mxu0
  %538 = vdwg.mxu0
  %v539 = vadd.f32 %v142, %v536
  %v540 = vxor.u32 %v539, 2147483648
  %v541 = vmul.f32 %v540, 1.442695
  %v542 = vpow.pop %v541
  %v543 = vadd.f32 %v542, 1.0
  %v544 = vrcp.pop %v543
  %v545 = vmul.f32 1.0, %v544
  %v546 = vtanh.pop %v539
  %v547 = vmul.f32 %v545, %v457
  %549 = vrot.lane.b32.xlu0 %v546, 32
  %v550 = vpop.permute.xlu0 %549
  %v552 = vmul.f32 %v545, %v550
  %554 = vrot.lane.b32.xlu0 %v552, 32
  %v555 = vpop.permute.xlu0 %554
  %v557 = vadd.f32 %v547, %v555
  %v558 = vtanh.pop %v557
  %560 = vrot.lane.b32.xlu0 %v558, 32
  %v561 = vpop.permute.xlu0 %560
  %v563 = vmul.f32 %v545, %v561
  %565 = vrot.lane.b32.xlu0 %v563, 64
  %v566 = vpop.permute.xlu0 %565
  %v567 = vsel %vm165, %v566, 0
  %569 = vmatprep.subr.mxu0 0.0
  %570 = vmatpush1.msra.mxu0 %v11
  %571 = vmatprep.subr.mxu0 0.0
  %572 = vmatpush1.msra.mxu0 %v12
  %573 = vmatprep.subr.mxu0 0.0
  %574 = vmatpush1.msra.mxu0 %v13
  %575 = vmatprep.subr.mxu0 0.0
  %576 = vmatpush1.msra.mxu0 %v14
  %577 = vmatprep.subr.mxu0 0.0
  %578 = vmatpush1.msra.mxu0 0.0
  %579 = vmatprep.subr.mxu0 0.0
  %580 = vmatpush1.msra.mxu0 0.0
  %581 = vmatprep.subr.mxu0 0.0
  %582 = vmatpush1.msra.mxu0 0.0
  %583 = vmatprep.subr.mxu0 0.0
  %584 = vmatpush1.msra.mxu0 0.0
  %585 = vmatprep.subr.mxu0 0.0
  %586 = vmatpush1.msra.mxu0 0.0
  %587 = vmatprep.subr.mxu0 0.0
  %588 = vmatpush1.msra.mxu0 0.0
  %589 = vmatprep.subr.mxu0 0.0
  %590 = vmatpush1.msra.mxu0 0.0
  %591 = vmatprep.subr.mxu0 0.0
  %592 = vmatpush1.msra.mxu0 0.0
  %593 = vmatprep.subr.mxu0 0.0
  %594 = vmatpush1.msra.mxu0 0.0
  %595 = vmatprep.subr.mxu0 0.0
  %596 = vmatpush1.msra.mxu0 0.0
  %597 = vmatprep.subr.mxu0 0.0
  %598 = vmatpush1.msra.mxu0 0.0
  %599 = vmatprep.subr.mxu0 0.0
  %600 = vmatpush1.msra.mxu0 0.0
  %601 = vmatprep.subr.mxu0 0.0
  %602 = vmatpush1.msra.mxu0 0.0
  %603 = vmatprep.subr.mxu0 0.0
  %604 = vmatpush1.msra.mxu0 0.0
  %605 = vmatprep.subr.mxu0 0.0
  %606 = vmatpush1.msra.mxu0 0.0
  %607 = vmatprep.subr.mxu0 0.0
  %608 = vmatpush1.msra.mxu0 0.0
  %609 = vmatprep.subr.mxu0 0.0
  %610 = vmatpush1.msra.mxu0 0.0
  %611 = vmatprep.subr.mxu0 0.0
  %612 = vmatpush1.msra.mxu0 0.0
  %613 = vmatprep.subr.mxu0 0.0
  %614 = vmatpush1.msra.mxu0 0.0
  %615 = vmatprep.subr.mxu0 0.0
  %616 = vmatpush1.msra.mxu0 0.0
  %617 = vmatprep.subr.mxu0 0.0
  %618 = vmatpush1.msra.mxu0 0.0
  %619 = vmatprep.subr.mxu0 0.0
  %620 = vmatpush1.msra.mxu0 0.0
  %621 = vmatprep.subr.mxu0 0.0
  %622 = vmatpush1.msra.mxu0 0.0
  %623 = vmatprep.subr.mxu0 0.0
  %624 = vmatpush1.msra.mxu0 0.0
  %625 = vmatprep.subr.mxu0 0.0
  %626 = vmatpush1.msra.mxu0 0.0
  %627 = vmatprep.subr.mxu0 0.0
  %628 = vmatpush1.msra.mxu0 0.0
  %629 = vmatprep.subr.mxu0 0.0
  %630 = vmatpush1.msra.mxu0 0.0
  %631 = vmatprep.subr.mxu0 0.0
  %632 = vmatpush1.msra.mxu0 0.0
  %633 = vmatprep.mubr.f32.mxu0 0.0
  %634 = vmatmul.mubr.f32.gmra.mrb[0].mxu0 %v567
  %v635 = vpop.f32.mrb[0].mxu0
  %v636 = vadd.f32 0.0, %v635
  %v637 = vpop.f32.mrb[0].mxu0
  %638 = vdwg.mxu0
  %v639 = vadd.f32 %v147, %v636
  %v640 = vxor.u32 %v639, 2147483648
  %v641 = vmul.f32 %v640, 1.442695
  %v642 = vpow.pop %v641
  %v643 = vadd.f32 %v642, 1.0
  %v644 = vrcp.pop %v643
  %v645 = vmul.f32 1.0, %v644
  %v646 = vtanh.pop %v639
  %v647 = vmul.f32 %v645, %v557
  %649 = vrot.lane.b32.xlu0 %v646, 32
  %v650 = vpop.permute.xlu0 %649
  %v652 = vmul.f32 %v645, %v650
  %654 = vrot.lane.b32.xlu0 %v652, 32
  %v655 = vpop.permute.xlu0 %654
  %v657 = vadd.f32 %v647, %v655
  %v658 = vtanh.pop %v657
  %660 = vrot.lane.b32.xlu0 %v658, 32
  %v661 = vpop.permute.xlu0 %660
  %v663 = vmul.f32 %v645, %v661
  %665 = vrot.lane.b32.xlu0 %v663, 64
  %v666 = vpop.permute.xlu0 %665
  %v667 = vsel %vm165, %v666, 0
  %669 = vmatprep.subr.mxu0 0.0
  %670 = vmatpush1.msra.mxu0 %v11
  %671 = vmatprep.subr.mxu0 0.0
  %672 = vmatpush1.msra.mxu0 %v12
  %673 = vmatprep.subr.mxu0 0.0
  %674 = vmatpush1.msra.mxu0 %v13
  %675 = vmatprep.subr.mxu0 0.0
  %676 = vmatpush1.msra.mxu0 %v14
  %677 = vmatprep.subr.mxu0 0.0
  %678 = vmatpush1.msra.mxu0 0.0
  %679 = vmatprep.subr.mxu0 0.0
  %680 = vmatpush1.msra.mxu0 0.0
  %681 = vmatprep.subr.mxu0 0.0
  %682 = vmatpush1.msra.mxu0 0.0
  %683 = vmatprep.subr.mxu0 0.0
  %684 = vmatpush1.msra.mxu0 0.0
  %685 = vmatprep.subr.mxu0 0.0
  %686 = vmatpush1.msra.mxu0 0.0
  %687 = vmatprep.subr.mxu0 0.0
  %688 = vmatpush1.msra.mxu0 0.0
  %689 = vmatprep.subr.mxu0 0.0
  %690 = vmatpush1.msra.mxu0 0.0
  %691 = vmatprep.subr.mxu0 0.0
  %692 = vmatpush1.msra.mxu0 0.0
  %693 = vmatprep.subr.mxu0 0.0
  %694 = vmatpush1.msra.mxu0 0.0
  %695 = vmatprep.subr.mxu0 0.0
  %696 = vmatpush1.msra.mxu0 0.0
  %697 = vmatprep.subr.mxu0 0.0
  %698 = vmatpush1.msra.mxu0 0.0
  %699 = vmatprep.subr.mxu0 0.0
  %700 = vmatpush1.msra.mxu0 0.0
  %701 = vmatprep.subr.mxu0 0.0
  %702 = vmatpush1.msra.mxu0 0.0
  %703 = vmatprep.subr.mxu0 0.0
  %704 = vmatpush1.msra.mxu0 0.0
  %705 = vmatprep.subr.mxu0 0.0
  %706 = vmatpush1.msra.mxu0 0.0
  %707 = vmatprep.subr.mxu0 0.0
  %708 = vmatpush1.msra.mxu0 0.0
  %709 = vmatprep.subr.mxu0 0.0
  %710 = vmatpush1.msra.mxu0 0.0
  %711 = vmatprep.subr.mxu0 0.0
  %712 = vmatpush1.msra.mxu0 0.0
  %713 = vmatprep.subr.mxu0 0.0
  %714 = vmatpush1.msra.mxu0 0.0
  %715 = vmatprep.subr.mxu0 0.0
  %716 = vmatpush1.msra.mxu0 0.0
  %717 = vmatprep.subr.mxu0 0.0
  %718 = vmatpush1.msra.mxu0 0.0
  %719 = vmatprep.subr.mxu0 0.0
  %720 = vmatpush1.msra.mxu0 0.0
  %721 = vmatprep.subr.mxu0 0.0
  %722 = vmatpush1.msra.mxu0 0.0
  %723 = vmatprep.subr.mxu0 0.0
  %724 = vmatpush1.msra.mxu0 0.0
  %725 = vmatprep.subr.mxu0 0.0
  %726 = vmatpush1.msra.mxu0 0.0
  %727 = vmatprep.subr.mxu0 0.0
  %728 = vmatpush1.msra.mxu0 0.0
  %729 = vmatprep.subr.mxu0 0.0
  %730 = vmatpush1.msra.mxu0 0.0
  %731 = vmatprep.subr.mxu0 0.0
  %732 = vmatpush1.msra.mxu0 0.0
  %733 = vmatprep.mubr.f32.mxu0 0.0
  %734 = vmatmul.mubr.f32.gmra.mrb[0].mxu0 %v667
  %v735 = vpop.f32.mrb[0].mxu0
  %v736 = vadd.f32 0.0, %v735
  %v737 = vpop.f32.mrb[0].mxu0
  %738 = vdwg.mxu0
  %v739 = vadd.f32 %v152, %v736
  %v740 = vxor.u32 %v739, 2147483648
  %v741 = vmul.f32 %v740, 1.442695
  %v742 = vpow.pop %v741
  %v743 = vadd.f32 %v742, 1.0
  %v744 = vrcp.pop %v743
  %v745 = vmul.f32 1.0, %v744
  %v746 = vtanh.pop %v739
  %v747 = vmul.f32 %v745, %v657
  %749 = vrot.lane.b32.xlu0 %v746, 32
  %v750 = vpop.permute.xlu0 %749
  %v752 = vmul.f32 %v745, %v750
  %754 = vrot.lane.b32.xlu0 %v752, 32
  %v755 = vpop.permute.xlu0 %754
  %v757 = vadd.f32 %v747, %v755
  %v758 = vtanh.pop %v757
  %760 = vrot.lane.b32.xlu0 %v758, 32
  %v761 = vpop.permute.xlu0 %760
  %v763 = vmul.f32 %v745, %v761
  %765 = vrot.lane.b32.xlu0 %v763, 64
  %v766 = vpop.permute.xlu0 %765
  %v767 = vsel %vm165, %v766, 0
  %769 = vmatprep.subr.mxu0 0.0
  %770 = vmatpush1.msra.mxu0 %v11
  %771 = vmatprep.subr.mxu0 0.0
  %772 = vmatpush1.msra.mxu0 %v12
  %773 = vmatprep.subr.mxu0 0.0
  %774 = vmatpush1.msra.mxu0 %v13
  %775 = vmatprep.subr.mxu0 0.0
  %776 = vmatpush1.msra.mxu0 %v14
  %777 = vmatprep.subr.mxu0 0.0
  %778 = vmatpush1.msra.mxu0 0.0
  %779 = vmatprep.subr.mxu0 0.0
  %780 = vmatpush1.msra.mxu0 0.0
  %781 = vmatprep.subr.mxu0 0.0
  %782 = vmatpush1.msra.mxu0 0.0
  %783 = vmatprep.subr.mxu0 0.0
  %784 = vmatpush1.msra.mxu0 0.0
  %785 = vmatprep.subr.mxu0 0.0
  %786 = vmatpush1.msra.mxu0 0.0
  %787 = vmatprep.subr.mxu0 0.0
  %788 = vmatpush1.msra.mxu0 0.0
  %789 = vmatprep.subr.mxu0 0.0
  %790 = vmatpush1.msra.mxu0 0.0
  %791 = vmatprep.subr.mxu0 0.0
  %792 = vmatpush1.msra.mxu0 0.0
  %793 = vmatprep.subr.mxu0 0.0
  %794 = vmatpush1.msra.mxu0 0.0
  %795 = vmatprep.subr.mxu0 0.0
  %796 = vmatpush1.msra.mxu0 0.0
  %797 = vmatprep.subr.mxu0 0.0
  %798 = vmatpush1.msra.mxu0 0.0
  %799 = vmatprep.subr.mxu0 0.0
  %800 = vmatpush1.msra.mxu0 0.0
  %801 = vmatprep.subr.mxu0 0.0
  %802 = vmatpush1.msra.mxu0 0.0
  %803 = vmatprep.subr.mxu0 0.0
  %804 = vmatpush1.msra.mxu0 0.0
  %805 = vmatprep.subr.mxu0 0.0
  %806 = vmatpush1.msra.mxu0 0.0
  %807 = vmatprep.subr.mxu0 0.0
  %808 = vmatpush1.msra.mxu0 0.0
  %809 = vmatprep.subr.mxu0 0.0
  %810 = vmatpush1.msra.mxu0 0.0
  %811 = vmatprep.subr.mxu0 0.0
  %812 = vmatpush1.msra.mxu0 0.0
  %813 = vmatprep.subr.mxu0 0.0
  %814 = vmatpush1.msra.mxu0 0.0
  %815 = vmatprep.subr.mxu0 0.0
  %816 = vmatpush1.msra.mxu0 0.0
  %817 = vmatprep.subr.mxu0 0.0
  %818 = vmatpush1.msra.mxu0 0.0
  %819 = vmatprep.subr.mxu0 0.0
  %820 = vmatpush1.msra.mxu0 0.0
  %821 = vmatprep.subr.mxu0 0.0
  %822 = vmatpush1.msra.mxu0 0.0
  %823 = vmatprep.subr.mxu0 0.0
  %824 = vmatpush1.msra.mxu0 0.0
  %825 = vmatprep.subr.mxu0 0.0
  %826 = vmatpush1.msra.mxu0 0.0
  %827 = vmatprep.subr.mxu0 0.0
  %828 = vmatpush1.msra.mxu0 0.0
  %829 = vmatprep.subr.mxu0 0.0
  %830 = vmatpush1.msra.mxu0 0.0
  %831 = vmatprep.subr.mxu0 0.0
  %832 = vmatpush1.msra.mxu0 0.0
  %833 = vmatprep.mubr.f32.mxu0 0.0
  %834 = vmatmul.mubr.f32.gmra.mrb[0].mxu0 %v767
  %v835 = vpop.f32.mrb[0].mxu0
  %v836 = vadd.f32 0.0, %v835
  %v837 = vpop.f32.mrb[0].mxu0
  %838 = vdwg.mxu0
  %v839 = vadd.f32 %v157, %v836
  %v840 = vxor.u32 %v839, 2147483648
  %v841 = vmul.f32 %v840, 1.442695
  %v842 = vpow.pop %v841
  %v843 = vadd.f32 %v842, 1.0
  %v844 = vrcp.pop %v843
  %v845 = vmul.f32 1.0, %v844
  %v846 = vtanh.pop %v839
  %v847 = vmul.f32 %v845, %v757
  %849 = vrot.lane.b32.xlu0 %v846, 32
  %v850 = vpop.permute.xlu0 %849
  %v852 = vmul.f32 %v845, %v850
  %854 = vrot.lane.b32.xlu0 %v852, 32
  %v855 = vpop.permute.xlu0 %854
  %v857 = vadd.f32 %v847, %v855
  %v858 = vtanh.pop %v857
  %860 = vrot.lane.b32.xlu0 %v858, 32
  %v861 = vpop.permute.xlu0 %860
  %v863 = vmul.f32 %v845, %v861
  %865 = vrot.lane.b32.xlu0 %v863, 64
  %v866 = vpop.permute.xlu0 %865
  %v867 = vsel %vm165, %v866, 0
  %869 = vmatprep.subr.mxu0 0.0
  %870 = vmatpush1.msra.mxu0 %v11
  %871 = vmatprep.subr.mxu0 0.0
  %872 = vmatpush1.msra.mxu0 %v12
  %873 = vmatprep.subr.mxu0 0.0
  %874 = vmatpush1.msra.mxu0 %v13
  %875 = vmatprep.subr.mxu0 0.0
  %876 = vmatpush1.msra.mxu0 %v14
  %877 = vmatprep.subr.mxu0 0.0
  %878 = vmatpush1.msra.mxu0 0.0
  %879 = vmatprep.subr.mxu0 0.0
  %880 = vmatpush1.msra.mxu0 0.0
  %881 = vmatprep.subr.mxu0 0.0
  %882 = vmatpush1.msra.mxu0 0.0
  %883 = vmatprep.subr.mxu0 0.0
  %884 = vmatpush1.msra.mxu0 0.0
  %885 = vmatprep.subr.mxu0 0.0
  %886 = vmatpush1.msra.mxu0 0.0
  %887 = vmatprep.subr.mxu0 0.0
  %888 = vmatpush1.msra.mxu0 0.0
  %889 = vmatprep.subr.mxu0 0.0
  %890 = vmatpush1.msra.mxu0 0.0
  %891 = vmatprep.subr.mxu0 0.0
  %892 = vmatpush1.msra.mxu0 0.0
  %893 = vmatprep.subr.mxu0 0.0
  %894 = vmatpush1.msra.mxu0 0.0
  %895 = vmatprep.subr.mxu0 0.0
  %896 = vmatpush1.msra.mxu0 0.0
  %897 = vmatprep.subr.mxu0 0.0
  %898 = vmatpush1.msra.mxu0 0.0
  %899 = vmatprep.subr.mxu0 0.0
  %900 = vmatpush1.msra.mxu0 0.0
  %901 = vmatprep.subr.mxu0 0.0
  %902 = vmatpush1.msra.mxu0 0.0
  %903 = vmatprep.subr.mxu0 0.0
  %904 = vmatpush1.msra.mxu0 0.0
  %905 = vmatprep.subr.mxu0 0.0
  %906 = vmatpush1.msra.mxu0 0.0
  %907 = vmatprep.subr.mxu0 0.0
  %908 = vmatpush1.msra.mxu0 0.0
  %909 = vmatprep.subr.mxu0 0.0
  %910 = vmatpush1.msra.mxu0 0.0
  %911 = vmatprep.subr.mxu0 0.0
  %912 = vmatpush1.msra.mxu0 0.0
  %913 = vmatprep.subr.mxu0 0.0
  %914 = vmatpush1.msra.mxu0 0.0
  %915 = vmatprep.subr.mxu0 0.0
  %916 = vmatpush1.msra.mxu0 0.0
  %917 = vmatprep.subr.mxu0 0.0
  %918 = vmatpush1.msra.mxu0 0.0
  %919 = vmatprep.subr.mxu0 0.0
  %920 = vmatpush1.msra.mxu0 0.0
  %921 = vmatprep.subr.mxu0 0.0
  %922 = vmatpush1.msra.mxu0 0.0
  %923 = vmatprep.subr.mxu0 0.0
  %924 = vmatpush1.msra.mxu0 0.0
  %925 = vmatprep.subr.mxu0 0.0
  %926 = vmatpush1.msra.mxu0 0.0
  %927 = vmatprep.subr.mxu0 0.0
  %928 = vmatpush1.msra.mxu0 0.0
  %929 = vmatprep.subr.mxu0 0.0
  %930 = vmatpush1.msra.mxu0 0.0
  %931 = vmatprep.subr.mxu0 0.0
  %932 = vmatpush1.msra.mxu0 0.0
  %933 = vmatprep.mubr.f32.mxu0 0.0
  %934 = vmatmul.mubr.f32.gmra.mrb[0].mxu0 %v867
  %v935 = vpop.f32.mrb[0].mxu0
  %v936 = vadd.f32 0.0, %v935
  %v937 = vpop.f32.mrb[0].mxu0
  %938 = vdwg.mxu0
  %v939 = vadd.f32 %v162, %v936
  %v940 = vxor.u32 %v939, 2147483648
  %v941 = vmul.f32 %v940, 1.442695
  %v942 = vpow.pop %v941
  %v943 = vadd.f32 %v942, 1.0
  %v944 = vrcp.pop %v943
  %v945 = vmul.f32 1.0, %v944
  %v946 = vtanh.pop %v939
  %v947 = vmul.f32 %v945, %v857
  %949 = vrot.lane.b32.xlu0 %v946, 32
  %v950 = vpop.permute.xlu0 %949
  %v952 = vmul.f32 %v945, %v950
  %954 = vrot.lane.b32.xlu0 %v952, 32
  %v955 = vpop.permute.xlu0 %954
  %v957 = vadd.f32 %v947, %v955
  %v958 = vtanh.pop %v957
  %960 = vrot.lane.b32.xlu0 %v958, 32
  %v961 = vpop.permute.xlu0 %960
  %v963 = vmul.f32 %v945, %v961
  %v964 = vrot.slane %v363, 3
  %v966 = vrot.slane %v563, 2
  %v968 = vrot.slane %v763, 1
  %vm970 = vcmask 1040384
  %v971 = vsel %vm970, %v964, %v966
  %vm972 = vcmask 1041408
  %v973 = vsel %vm972, %v971, %v968
  %vm974 = vcmask 1042432
  %v975 = vsel %vm974, %v973, %v963
  %v976 = vlaneseq
  %v977 = vshrl.u32 %v976, 7
  %v978 = vsub.s32 0, %v977
  %v979 = vrot.slane %v17, %v978
  %981 = vrot.lane.b32.xlu0 %v979, 64
  %v982 = vpop.permute.xlu0 %981
  %v984 = vmul.f32 %v975, %v982
  %986 = vrot.lane.b32.xlu0 %v984, 64
  %v987 = vpop.permute.xlu0 %986
  %vm989 = vcmask 257024
  %v990 = vsel %vm989, %v987, 0.0
  %991 = vadd.xlane.f32.xlu0 %v990
  %v992 = vpop.xlane.xlu0 %991
  %v993 = vlaneseq
  %v994 = vshrl.u32 %v993, 7
  %v995 = vsub.s32 0, %v994
  %v996 = vrot.slane %v18, %v995
  %v997 = vadd.f32 %v992, %v996
  %vm998 = vcmask 3072
  %999 = vst.msk [vmem:[%s2] sm:$0xf] %vm998, %v997
  // Predicated region
  $region10: #{env_lstm_forward.1} parent=0 // pred_check
    _
  $region11: #{env_lstm_forward.1} parent=0 // pred_check_branch
    %1001 = sbr.rel (0) target = $region13
  $region12: #{env_lstm_forward.1} parent=0 // pred_region
    _
  $region13: #{env_lstm_forward.1} parent=0 // pred_fallthru
    _
  // Predicated region
  $region14: #{env_lstm_forward.1} parent=0 // pred_check
    _
  $region15: #{env_lstm_forward.1} parent=0 // pred_check_branch
    %1003 = sbr.rel (0) target = $region17
  $region16: #{env_lstm_forward.1} parent=0 // pred_region
    _
  $region17: #{env_lstm_forward.1} parent=0 // pred_fallthru
    _

</llo_original>
